<compile_context>
chip_gen: v5e
topology: v5e:2x2
jax: 0.10.0
libtpu: 0.0.40
codegen_flags: <defaults>
</compile_context>

<pallas_src>
import jax
import jax.numpy as jnp
from jax import lax
from jax.experimental import pallas as pl
from jax.experimental.pallas import tpu as pltpu

EPS = 1e-5          # nn.BatchNorm1d default
NEG_SLOPE = 0.01    # nn.LeakyReLU default
LANE = 128          # TPU lane width


def _round_up(n, m):
    return (n + m - 1) // m * m


def _pad_axis(a, axis, target):
    pad = target - a.shape[axis]
    if pad == 0:
        return a
    widths = [(0, 0)] * a.ndim
    widths[axis] = (0, pad)
    return jnp.pad(a, widths)


def _bn_lrelu(h, gamma, beta):
    """Training-mode BatchNorm1d (biased variance) fused into a single
    per-feature scale/shift, single-pass stats, followed by LeakyReLU(0.01).
    h: (B, F) f32; gamma/beta: (1, F) f32."""
    inv_n = 1.0 / h.shape[0]
    mean = jnp.sum(h, axis=0, keepdims=True) * inv_n
    mean_sq = jnp.sum(h * h, axis=0, keepdims=True) * inv_n
    var = mean_sq - mean * mean
    scale = gamma * lax.rsqrt(var + EPS)
    shift = beta - mean * scale
    y = h * scale + shift
    return jnp.where(y >= 0, y, NEG_SLOPE * y)


def encoder_kernel(x_ref, w1_ref, g1_ref, be1_ref,
                   w2_ref, g2_ref, be2_ref, o_ref, h1_ref):
    # Layer 1 is computed once (first grid step) into a persistent bf16 VMEM
    # scratch; every grid step then emits one lane-dense tile of layer 2.
    @pl.when(pl.program_id(0) == 0)
    def _():
        x = x_ref[...].astype(jnp.bfloat16)
        h1 = jnp.dot(x, w1_ref[...], preferred_element_type=jnp.float32)
        h1 = _bn_lrelu(h1, g1_ref[...], be1_ref[...])
        h1_ref[...] = h1.astype(jnp.bfloat16)

    # Layer 2 tile: bf16 MXU matmul -> fused BN scale/shift -> LeakyReLU.
    # Feature tiling is exact: BN stats are per-feature over the full batch.
    h2 = jnp.dot(h1_ref[...], w2_ref[...], preferred_element_type=jnp.float32)
    h2 = _bn_lrelu(h2, g2_ref[...], be2_ref[...])
    o_ref[...] = h2.astype(o_ref.dtype)


def encoder_forward(x, params, *, tile_n=512):
    """x: (B, d_in) float32. params: dict from init_params ((in, out) weights)."""
    B, d_in = x.shape
    w1, g1, be1 = params["w1"], params["g1"], params["be1"]
    w2, g2, be2 = params["w2"], params["g2"], params["be2"]
    h1, h2 = w1.shape[1], w2.shape[1]

    # Zero-pad feature dims to lane multiples (exact; see header). bf16 weights.
    d_in_p, h1_p, h2_p = (_round_up(d, LANE) for d in (d_in, h1, h2))
    x_p = _pad_axis(x, 1, d_in_p)
    w1_p = _pad_axis(_pad_axis(w1, 0, d_in_p), 1, h1_p).astype(jnp.bfloat16)
    w2_p = _pad_axis(_pad_axis(w2, 0, h1_p), 1, h2_p).astype(jnp.bfloat16)
    g1_p = _pad_axis(g1, 1, h1_p)
    be1_p = _pad_axis(be1, 1, h1_p)
    g2_p = _pad_axis(g2, 1, h2_p)
    be2_p = _pad_axis(be2, 1, h2_p)

    tn = min(tile_n, h2_p)           # layer-2 output-feature tile (lane multiple)
    grid = (h2_p // tn,)

    flops = 2 * B * d_in_p * h1_p + 2 * B * h1_p * h2_p
    bytes_accessed = sum(int(a.size) * a.dtype.itemsize for a in
                         (x_p, w1_p, w2_p, g1_p, be1_p, g2_p, be2_p))
    bytes_accessed += B * h2_p * 4

    out_p = pl.pallas_call(
        encoder_kernel,
        out_shape=jax.ShapeDtypeStruct((B, h2_p), jnp.float32),
        grid_spec=pltpu.PrefetchScalarGridSpec(
            num_scalar_prefetch=0,
            grid=grid,
            in_specs=[
                pl.BlockSpec((B, d_in_p), lambda j: (0, 0)),     # x (f32)
                pl.BlockSpec((d_in_p, h1_p), lambda j: (0, 0)),  # w1 (bf16)
                pl.BlockSpec((1, h1_p), lambda j: (0, 0)),       # gamma1
                pl.BlockSpec((1, h1_p), lambda j: (0, 0)),       # beta1
                pl.BlockSpec((h1_p, tn), lambda j: (0, j)),      # w2 tile (bf16)
                pl.BlockSpec((1, tn), lambda j: (0, j)),         # gamma2 tile
                pl.BlockSpec((1, tn), lambda j: (0, j)),         # beta2 tile
            ],
            out_specs=pl.BlockSpec((B, tn), lambda j: (0, j)),
            scratch_shapes=[pltpu.VMEM((B, h1_p), jnp.bfloat16)],
        ),
        compiler_params=pltpu.CompilerParams(
            # "arbitrary": step j == 0 fills the layer-1 scratch that later
            # steps reuse, so this axis must run sequentially on one core.
            # TODO(synk): for v7x megacore, recompute layer 1 per core to
            # allow a "parallel" feature axis.
            dimension_semantics=("arbitrary",),
        ),
        cost_estimate=pl.CostEstimate(
            flops=flops,
            transcendentals=h1_p + h2_p,
            bytes_accessed=bytes_accessed,
        ),
    )(x_p, w1_p, g1_p, be1_p, w2_p, g2_p, be2_p)

    return out_p[:, :h2]


def init_params(key, d_in, h1, h2):
    """Matches initialize_weights: Linear W ~ N(0, 0.02), bias = 0 (dropped:
    any pre-BN additive bias is absorbed by the batch-mean subtraction),
    BatchNorm gamma = 1, beta = 0. Weights stored transposed as (in, out)."""
    k1, k2 = jax.random.split(key, 2)
    return {
        "w1": 0.02 * jax.random.normal(k1, (d_in, h1), jnp.float32),
        "g1": jnp.ones((1, h1), jnp.float32),
        "be1": jnp.zeros((1, h1), jnp.float32),
        "w2": 0.02 * jax.random.normal(k2, (h1, h2), jnp.float32),
        "g2": jnp.ones((1, h2), jnp.float32),
        "be2": jnp.zeros((1, h2), jnp.float32),
    }


def encoder_reference_f32(x, p):
    """Pure-f32 reference matching the PyTorch module (training-mode BN)."""
    def layer(h, w, g, b):
        h = h @ w
        m = h.mean(0, keepdims=True)
        v = ((h - m) ** 2).mean(0, keepdims=True)
        h = (h - m) / jnp.sqrt(v + EPS) * g + b
        return jnp.where(h >= 0, h, NEG_SLOPE * h)
    h = layer(x, p["w1"], p["g1"], p["be1"])
    return layer(h, p["w2"], p["g2"], p["be2"])


def encoder_reference_bf16(x, p):
    """Reference using the same bf16-matmul / fused-BN math as the kernel."""
    def layer(h, w, g, b):
        h = jnp.dot(h.astype(jnp.bfloat16), w.astype(jnp.bfloat16),
                    preferred_element_type=jnp.float32)
        return _bn_lrelu(h, g, b)
    h = layer(x, p["w1"], p["g1"], p["be1"])
    return layer(h, p["w2"], p["g2"], p["be2"])


if __name__ == "__main__":
    B, D_IN, H1, H2 = 8, 32, 64, 32

    key = jax.random.PRNGKey(0)
    kx, kp = jax.random.split(key)
    x = jax.random.normal(kx, (B, D_IN), jnp.float32)
    params = init_params(kp, D_IN, H1, H2)

    out = jax.block_until_ready(encoder_forward(x, params))
    assert out.shape == (B, H2)

    # Tight check vs a reference using identical bf16-matmul math.
    ref_bf16 = encoder_reference_bf16(x, params)
    assert jnp.allclose(out, ref_bf16, atol=2e-3, rtol=2e-3), "mismatch vs bf16 reference"

    # Sanity check vs the full-f32 module math (bf16 matmuls introduce ~1e-2
    # relative error on the BN-normalized O(1) outputs).
    ref_f32 = encoder_reference_f32(x, params)
    assert jnp.allclose(out, ref_f32, atol=1e-1, rtol=1e-1), "mismatch vs f32 reference"

    print("KERNEL_OK")
</pallas_src>

<mosaic_0001>
module attributes {stable_mosaic.version = 11 : i64} {
  func.func @encoder_kernel(%arg0: i32, %arg1: memref<8x128xf32, #tpu.memory_space<vmem>>, %arg2: memref<128x128xbf16, #tpu.memory_space<vmem>>, %arg3: memref<1x128xf32, #tpu.memory_space<vmem>>, %arg4: memref<1x128xf32, #tpu.memory_space<vmem>>, %arg5: memref<128x128xbf16, #tpu.memory_space<vmem>>, %arg6: memref<1x128xf32, #tpu.memory_space<vmem>>, %arg7: memref<1x128xf32, #tpu.memory_space<vmem>>, %arg8: memref<8x128xf32, #tpu.memory_space<vmem>>, %arg9: memref<8x128xbf16, #tpu.memory_space<vmem>>) attributes {dimension_semantics = [#tpu.dimension_semantics<arbitrary>], iteration_bounds = array<i64: 1>, scalar_prefetch = 0 : i64, scratch_operands = 1 : i64, tpu.core_type = #tpu.core_type<tc>, window_params = [{pipeline_mode = #tpu.pipeline_mode<synchronous>, transform_indices = @transform_0, window_bounds = array<i64: 8, 128>}, {pipeline_mode = #tpu.pipeline_mode<synchronous>, transform_indices = @transform_1, window_bounds = array<i64: 128, 128>}, {pipeline_mode = #tpu.pipeline_mode<synchronous>, transform_indices = @transform_2, window_bounds = array<i64: 1, 128>}, {pipeline_mode = #tpu.pipeline_mode<synchronous>, transform_indices = @transform_3, window_bounds = array<i64: 1, 128>}, {transform_indices = @transform_4, window_bounds = array<i64: 128, 128>}, {transform_indices = @transform_5, window_bounds = array<i64: 1, 128>}, {transform_indices = @transform_6, window_bounds = array<i64: 1, 128>}, {transform_indices = @transform_7, window_bounds = array<i64: 8, 128>}]} {
    %c0_i32 = arith.constant 0 : i32
    %0 = arith.cmpi eq, %arg0, %c0_i32 : i32
    %1 = arith.extui %0 : i1 to i32
    %c0_i32_0 = arith.constant 0 : i32
    %2 = arith.cmpi ne, %1, %c0_i32_0 : i32
    scf.if %2 {
      %c0_17 = arith.constant 0 : index
      %c0_18 = arith.constant 0 : index
      %35 = vector.load %arg1[%c0_17, %c0_18] : memref<8x128xf32, #tpu.memory_space<vmem>>, vector<8x128xf32>
      %36 = arith.truncf %35 : vector<8x128xf32> to vector<8x128xbf16>
      %c0_19 = arith.constant 0 : index
      %c0_20 = arith.constant 0 : index
      %37 = vector.load %arg2[%c0_19, %c0_20] : memref<128x128xbf16, #tpu.memory_space<vmem>>, vector<128x128xbf16>
      %cst_21 = arith.constant dense<0.000000e+00> : vector<8x128xf32>
      %38 = tpu.matmul %36, %37, %cst_21 {dimension_numbers = #tpu.dot_dimension_numbers<[1], [0], [0], [1], [0, 0, 1, 1], [], []>} : vector<8x128xbf16>, vector<128x128xbf16>, vector<8x128xf32> -> vector<8x128xf32>
      %c0_22 = arith.constant 0 : index
      %c0_23 = arith.constant 0 : index
      %39 = vector.load %arg3[%c0_22, %c0_23] : memref<1x128xf32, #tpu.memory_space<vmem>>, vector<1x128xf32>
      %c0_24 = arith.constant 0 : index
      %c0_25 = arith.constant 0 : index
      %40 = vector.load %arg4[%c0_24, %c0_25] : memref<1x128xf32, #tpu.memory_space<vmem>>, vector<1x128xf32>
      %cst_26 = arith.constant dense<0.000000e+00> : vector<128xf32>
      %41 = vector.multi_reduction <add>, %38, %cst_26 [0] : vector<8x128xf32> to vector<128xf32>
      %42 = vector.shape_cast %41 : vector<128xf32> to vector<1x128xf32>
      %cst_27 = arith.constant 1.250000e-01 : f32
      %43 = vector.broadcast %cst_27 : f32 to vector<1x128xf32>
      %44 = arith.mulf %42, %43 : vector<1x128xf32>
      %45 = arith.mulf %38, %38 : vector<8x128xf32>
      %cst_28 = arith.constant dense<0.000000e+00> : vector<128xf32>
      %46 = vector.multi_reduction <add>, %45, %cst_28 [0] : vector<8x128xf32> to vector<128xf32>
      %47 = vector.shape_cast %46 : vector<128xf32> to vector<1x128xf32>
      %cst_29 = arith.constant 1.250000e-01 : f32
      %48 = vector.broadcast %cst_29 : f32 to vector<1x128xf32>
      %49 = arith.mulf %47, %48 : vector<1x128xf32>
      %50 = arith.mulf %44, %44 : vector<1x128xf32>
      %51 = arith.subf %49, %50 : vector<1x128xf32>
      %cst_30 = arith.constant 9.99999974E-6 : f32
      %52 = vector.broadcast %cst_30 : f32 to vector<1x128xf32>
      %53 = arith.addf %51, %52 : vector<1x128xf32>
      %54 = math.rsqrt %53 : vector<1x128xf32>
      %55 = arith.mulf %39, %54 : vector<1x128xf32>
      %56 = arith.mulf %44, %55 : vector<1x128xf32>
      %57 = arith.subf %40, %56 : vector<1x128xf32>
      %58 = vector.broadcast %55 : vector<1x128xf32> to vector<8x128xf32>
      %59 = arith.mulf %38, %58 : vector<8x128xf32>
      %60 = vector.broadcast %57 : vector<1x128xf32> to vector<8x128xf32>
      %61 = arith.addf %59, %60 : vector<8x128xf32>
      %cst_31 = arith.constant 0.000000e+00 : f32
      %62 = vector.broadcast %cst_31 : f32 to vector<8x128xf32>
      %63 = arith.cmpf oge, %61, %62 : vector<8x128xf32>
      %cst_32 = arith.constant 0.00999999977 : f32
      %64 = vector.broadcast %cst_32 : f32 to vector<8x128xf32>
      %65 = arith.mulf %64, %61 : vector<8x128xf32>
      %66 = arith.select %63, %61, %65 : vector<8x128xi1>, vector<8x128xf32>
      %67 = arith.truncf %66 : vector<8x128xf32> to vector<8x128xbf16>
      %c0_33 = arith.constant 0 : index
      %c0_34 = arith.constant 0 : index
      %68 = vector.load %arg9[%c0_33, %c0_34] : memref<8x128xbf16, #tpu.memory_space<vmem>>, vector<8x128xbf16>
      tpu.vector_store %arg9[%c0_33, %c0_34], %67 {strides = array<i32>} : memref<8x128xbf16, #tpu.memory_space<vmem>>, vector<8x128xbf16>,
    } else {
    }
    %c0 = arith.constant 0 : index
    %c0_1 = arith.constant 0 : index
    %3 = vector.load %arg9[%c0, %c0_1] : memref<8x128xbf16, #tpu.memory_space<vmem>>, vector<8x128xbf16>
    %c0_2 = arith.constant 0 : index
    %c0_3 = arith.constant 0 : index
    %4 = vector.load %arg5[%c0_2, %c0_3] : memref<128x128xbf16, #tpu.memory_space<vmem>>, vector<128x128xbf16>
    %cst = arith.constant dense<0.000000e+00> : vector<8x128xf32>
    %5 = tpu.matmul %3, %4, %cst {dimension_numbers = #tpu.dot_dimension_numbers<[1], [0], [0], [1], [0, 0, 1, 1], [], []>} : vector<8x128xbf16>, vector<128x128xbf16>, vector<8x128xf32> -> vector<8x128xf32>
    %c0_4 = arith.constant 0 : index
    %c0_5 = arith.constant 0 : index
    %6 = vector.load %arg6[%c0_4, %c0_5] : memref<1x128xf32, #tpu.memory_space<vmem>>, vector<1x128xf32>
    %c0_6 = arith.constant 0 : index
    %c0_7 = arith.constant 0 : index
    %7 = vector.load %arg7[%c0_6, %c0_7] : memref<1x128xf32, #tpu.memory_space<vmem>>, vector<1x128xf32>
    %cst_8 = arith.constant dense<0.000000e+00> : vector<128xf32>
    %8 = vector.multi_reduction <add>, %5, %cst_8 [0] : vector<8x128xf32> to vector<128xf32>
    %9 = vector.shape_cast %8 : vector<128xf32> to vector<1x128xf32>
    %cst_9 = arith.constant 1.250000e-01 : f32
    %10 = vector.broadcast %cst_9 : f32 to vector<1x128xf32>
    %11 = arith.mulf %9, %10 : vector<1x128xf32>
    %12 = arith.mulf %5, %5 : vector<8x128xf32>
    %cst_10 = arith.constant dense<0.000000e+00> : vector<128xf32>
    %13 = vector.multi_reduction <add>, %12, %cst_10 [0] : vector<8x128xf32> to vector<128xf32>
    %14 = vector.shape_cast %13 : vector<128xf32> to vector<1x128xf32>
    %cst_11 = arith.constant 1.250000e-01 : f32
    %15 = vector.broadcast %cst_11 : f32 to vector<1x128xf32>
    %16 = arith.mulf %14, %15 : vector<1x128xf32>
    %17 = arith.mulf %11, %11 : vector<1x128xf32>
    %18 = arith.subf %16, %17 : vector<1x128xf32>
    %cst_12 = arith.constant 9.99999974E-6 : f32
    %19 = vector.broadcast %cst_12 : f32 to vector<1x128xf32>
    %20 = arith.addf %18, %19 : vector<1x128xf32>
    %21 = math.rsqrt %20 : vector<1x128xf32>
    %22 = arith.mulf %6, %21 : vector<1x128xf32>
    %23 = arith.mulf %11, %22 : vector<1x128xf32>
    %24 = arith.subf %7, %23 : vector<1x128xf32>
    %25 = vector.broadcast %22 : vector<1x128xf32> to vector<8x128xf32>
    %26 = arith.mulf %5, %25 : vector<8x128xf32>
    %27 = vector.broadcast %24 : vector<1x128xf32> to vector<8x128xf32>
    %28 = arith.addf %26, %27 : vector<8x128xf32>
    %cst_13 = arith.constant 0.000000e+00 : f32
    %29 = vector.broadcast %cst_13 : f32 to vector<8x128xf32>
    %30 = arith.cmpf oge, %28, %29 : vector<8x128xf32>
    %cst_14 = arith.constant 0.00999999977 : f32
    %31 = vector.broadcast %cst_14 : f32 to vector<8x128xf32>
    %32 = arith.mulf %31, %28 : vector<8x128xf32>
    %33 = arith.select %30, %28, %32 : vector<8x128xi1>, vector<8x128xf32>
    %c0_15 = arith.constant 0 : index
    %c0_16 = arith.constant 0 : index
    %34 = vector.load %arg8[%c0_15, %c0_16] : memref<8x128xf32, #tpu.memory_space<vmem>>, vector<8x128xf32>
    tpu.vector_store %arg8[%c0_15, %c0_16], %33 {strides = array<i32>} : memref<8x128xf32, #tpu.memory_space<vmem>>, vector<8x128xf32>,
    return
  }
  func.func @transform_0(%arg0: i32) -> (i32, i32) {
    %c0_i32 = arith.constant 0 : i32
    %c0_i32_0 = arith.constant 0 : i32
    %c0_i32_1 = arith.constant 0 : i32
    return %c0_i32, %c0_i32_0 : i32, i32
  }
  func.func @transform_1(%arg0: i32) -> (i32, i32) {
    %c0_i32 = arith.constant 0 : i32
    %c0_i32_0 = arith.constant 0 : i32
    %c0_i32_1 = arith.constant 0 : i32
    return %c0_i32, %c0_i32_0 : i32, i32
  }
  func.func @transform_2(%arg0: i32) -> (i32, i32) {
    %c0_i32 = arith.constant 0 : i32
    %c0_i32_0 = arith.constant 0 : i32
    %c0_i32_1 = arith.constant 0 : i32
    return %c0_i32, %c0_i32_0 : i32, i32
  }
  func.func @transform_3(%arg0: i32) -> (i32, i32) {
    %c0_i32 = arith.constant 0 : i32
    %c0_i32_0 = arith.constant 0 : i32
    %c0_i32_1 = arith.constant 0 : i32
    return %c0_i32, %c0_i32_0 : i32, i32
  }
  func.func @transform_4(%arg0: i32) -> (i32, i32) {
    %c0_i32 = arith.constant 0 : i32
    %c0_i32_0 = arith.constant 0 : i32
    return %c0_i32, %arg0 : i32, i32
  }
  func.func @transform_5(%arg0: i32) -> (i32, i32) {
    %c0_i32 = arith.constant 0 : i32
    %c0_i32_0 = arith.constant 0 : i32
    return %c0_i32, %arg0 : i32, i32
  }
  func.func @transform_6(%arg0: i32) -> (i32, i32) {
    %c0_i32 = arith.constant 0 : i32
    %c0_i32_0 = arith.constant 0 : i32
    return %c0_i32, %arg0 : i32, i32
  }
  func.func @transform_7(%arg0: i32) -> (i32, i32) {
    %c0_i32 = arith.constant 0 : i32
    %c0_i32_0 = arith.constant 0 : i32
    return %c0_i32, %arg0 : i32, i32
  }
}

</mosaic_0001>

<llo_original>
// kernel: tpu_custom_call.1
$region0: #{tpu_custom_call.1}
  #allocation0 [shape = 'u32[]', space=smem, size = 0x4, offset = 0x4, fixed_abs, tag = 'smem constant byte address 0x4 - core index']
  #allocation1 [shape = 'u32[72,128]{1,0:T(1,128)}', space=vmem, size = 0x9000, scoped, tag = 'internal scratch']
  #allocation2 [shape = 'bf16[8,128]{1,0:T(8,128)(2,1)}', space=vmem, size = 0x800, scoped, tag = 'scratch operand']
  %s0 = inlined_call_operand.hbm [shape: f32[8,128], index: 0, kind: input, shape index: {}]
  %s1 = inlined_call_operand.hbm [shape: bf16[128,128], index: 1, kind: input, shape index: {}]
  %s2 = inlined_call_operand.vmem [shape: f32[1,128], index: 2, kind: input, shape index: {}]
  %s3 = inlined_call_operand.vmem [shape: f32[1,128], index: 3, kind: input, shape index: {}]
  %s4 = inlined_call_operand.hbm [shape: bf16[128,128], index: 4, kind: input, shape index: {}]
  %s5 = inlined_call_operand.vmem [shape: f32[1,128], index: 5, kind: input, shape index: {}]
  %s6 = inlined_call_operand.vmem [shape: f32[1,128], index: 6, kind: input, shape index: {}]
  %s7 = inlined_call_operand.hbm [shape: f32[8,128], index: 7, kind: output, shape index: {}]
  %s8 = sld [smem:[#allocation0]]
  $region54: #{tpu_custom_call.1} parent=0
    _
  %s10 = ssub.s32 1, %s8
  %s11 = scalar_select 0, %s10, %s8
  $region1: #{tpu_custom_call.1} parent=0
    #allocation3 [shape = 'u8[4096]{0}', space=vmem, size = 0x1000, scoped, tag = 'input window, operand 0, single buffered']
    #allocation4 [shape = 's32[1]{0}', space=sflag, size = 0x4, scoped, tag = 'scoped memory for tpu_custom_call.1']
    #allocation5 [shape = 's32[1]{0}', space=sflag, size = 0x4, scoped, tag = 'scoped memory for tpu_custom_call.1']
    #allocation6 [shape = 'u8[32768]{0}', space=vmem, size = 0x8000, scoped, tag = 'input window, operand 1, single buffered']
    #allocation7 [shape = 's32[1]{0}', space=sflag, size = 0x4, scoped, tag = 'scoped memory for tpu_custom_call.1']
    #allocation8 [shape = 'u8[32768]{0}', space=vmem, size = 0x8000, scoped, tag = 'input window, operand 4, single buffered']
    #allocation9 [shape = 'u8[4096]{0}', space=vmem, size = 0x1000, scoped, tag = 'output window, operand 0, single buffered']
    %12 = vsyncpa [#allocation4], 0
    %13 = vsyncpa [#allocation7], 0
    %14 = vsyncpa [#allocation5], 0
    // Predicated region
    $region2: #{tpu_custom_call.1} parent=1 // pred_check
      _
    $region3: #{tpu_custom_call.1} parent=1 // pred_check_branch
      %16 = sbr.rel (0) target = $region5
    $region4: #{tpu_custom_call.1} parent=1 // pred_region
      %18 = vsyncadd [#allocation4], 0
      %s20 = sshll.u32 %s0, 4
      %s21 = int_to_ptr.hbm [resolvable:$true] %s20
      %s22 = sshll.u32 [#allocation3], 4
      %s23 = int_to_ptr.vmem [resolvable:$true] %s22
      %25 = dma.hbm_to_vmem [thread:$0]  %s21, 128, %s23, [#allocation4]
    $region5: #{tpu_custom_call.1} parent=1 // pred_fallthru
      _
    // Predicated region
    $region6: #{tpu_custom_call.1} parent=1 // pred_check
      _
    $region7: #{tpu_custom_call.1} parent=1 // pred_check_branch
      %27 = sbr.rel (0) target = $region9
    $region8: #{tpu_custom_call.1} parent=1 // pred_region
      %29 = vsyncadd [#allocation7], 0
      %s30 = sshll.u32 %s1, 4
      %s31 = int_to_ptr.hbm [resolvable:$true] %s30
      %s32 = sshll.u32 [#allocation6], 4
      %s33 = int_to_ptr.vmem [resolvable:$true] %s32
      %38 = dma.hbm_to_vmem [thread:$0]  %s31, 1024, %s33, [#allocation7], 64, 64, 4
    $region9: #{tpu_custom_call.1} parent=1 // pred_fallthru
      _
    // Predicated region
    $region10: #{tpu_custom_call.1} parent=1 // pred_check
      _
    $region11: #{tpu_custom_call.1} parent=1 // pred_check_branch
      %40 = sbr.rel (0) target = $region13
    $region12: #{tpu_custom_call.1} parent=1 // pred_region
      _
    $region13: #{tpu_custom_call.1} parent=1 // pred_fallthru
      _
    // Predicated region
    $region14: #{tpu_custom_call.1} parent=1 // pred_check
      _
    $region15: #{tpu_custom_call.1} parent=1 // pred_check_branch
      %42 = sbr.rel (0) target = $region17
    $region16: #{tpu_custom_call.1} parent=1 // pred_region
      _
    $region17: #{tpu_custom_call.1} parent=1 // pred_fallthru
      _
    // Predicated region
    $region18: #{tpu_custom_call.1} parent=1 // pred_check
      _
    $region19: #{tpu_custom_call.1} parent=1 // pred_check_branch
      %44 = sbr.rel (0) target = $region21
    $region20: #{tpu_custom_call.1} parent=1 // pred_region
      %46 = vsyncadd [#allocation7], 0
      %s47 = sshll.u32 %s4, 4
      %s48 = int_to_ptr.hbm [resolvable:$true] %s47
      %s49 = sshll.u32 [#allocation8], 4
      %s50 = int_to_ptr.vmem [resolvable:$true] %s49
      %55 = dma.hbm_to_vmem [thread:$0]  %s48, 1024, %s50, [#allocation7], 64, 64, 4
    $region21: #{tpu_custom_call.1} parent=1 // pred_fallthru
      _
    // Predicated region
    $region22: #{tpu_custom_call.1} parent=1 // pred_check
      _
    $region23: #{tpu_custom_call.1} parent=1 // pred_check_branch
      %57 = sbr.rel (0) target = $region25
    $region24: #{tpu_custom_call.1} parent=1 // pred_region
      _
    $region25: #{tpu_custom_call.1} parent=1 // pred_fallthru
      _
    // Predicated region
    $region26: #{tpu_custom_call.1} parent=1 // pred_check
      _
    $region27: #{tpu_custom_call.1} parent=1 // pred_check_branch
      %59 = sbr.rel (0) target = $region29
    $region28: #{tpu_custom_call.1} parent=1 // pred_region
      _
    $region29: #{tpu_custom_call.1} parent=1 // pred_fallthru
      _
    // Predicated region
    $region30: #{tpu_custom_call.1} parent=1 // pred_check
      _
    $region31: #{tpu_custom_call.1} parent=1 // pred_check_branch
      %61 = sbr.rel (0) target = $region33
    $region32: #{tpu_custom_call.1} parent=1 // pred_region
      %63 = dma.done [#allocation4], 128
    $region33: #{tpu_custom_call.1} parent=1 // pred_fallthru
      _
    // Predicated region
    $region34: #{tpu_custom_call.1} parent=1 // pred_check
      _
    $region35: #{tpu_custom_call.1} parent=1 // pred_check_branch
      %65 = sbr.rel (0) target = $region37
    $region36: #{tpu_custom_call.1} parent=1 // pred_region
      %67 = dma.done [#allocation7], 1024
    $region37: #{tpu_custom_call.1} parent=1 // pred_fallthru
      _
    // Predicated region
    $region38: #{tpu_custom_call.1} parent=1 // pred_check
      _
    $region39: #{tpu_custom_call.1} parent=1 // pred_check_branch
      %69 = sbr.rel (0) target = $region41
    $region40: #{tpu_custom_call.1} parent=1 // pred_region
      %71 = dma.done [#allocation7], 1024
    $region41: #{tpu_custom_call.1} parent=1 // pred_fallthru
      _
    %p72 = scmp.eq.s32.totalorder 0, 0
    // Predicated region
    $region42: #{tpu_custom_call.1} parent=1 // pred_check
      %p73 = pneg %p72
    $region43: #{tpu_custom_call.1} parent=1 // pred_check_branch
      %75 = sbr.rel (%p73) target = $region45
    $region44: #{tpu_custom_call.1} parent=1 // pred_region
      %v76 = vld [vmem:[#allocation3] sm:$0xff]
      %v77 = vpack.c.bf16 %v76, %v76
      %v78 = vld [vmem:[#allocation6] sm:$0xf]
      %v79 = vld [vmem:[#allocation6 + $0x4] sm:$0xf]
      %v80 = vld [vmem:[#allocation6 + $0x8] sm:$0xf]
      %v81 = vld [vmem:[#allocation6 + $0xc] sm:$0xf]
      %v82 = vld [vmem:[#allocation6 + $0x10] sm:$0xf]
      %v83 = vld [vmem:[#allocation6 + $0x14] sm:$0xf]
      %v84 = vld [vmem:[#allocation6 + $0x18] sm:$0xf]
      %v85 = vld [vmem:[#allocation6 + $0x1c] sm:$0xf]
      %v86 = vld [vmem:[#allocation6 + $0x20] sm:$0xf]
      %v87 = vld [vmem:[#allocation6 + $0x24] sm:$0xf]
      %v88 = vld [vmem:[#allocation6 + $0x28] sm:$0xf]
      %v89 = vld [vmem:[#allocation6 + $0x2c] sm:$0xf]
      %v90 = vld [vmem:[#allocation6 + $0x30] sm:$0xf]
      %v91 = vld [vmem:[#allocation6 + $0x34] sm:$0xf]
      %v92 = vld [vmem:[#allocation6 + $0x38] sm:$0xf]
      %v93 = vld [vmem:[#allocation6 + $0x3c] sm:$0xf]
      %v110 = vunpack.c.l.b16 %v78
      %v111 = vunpack.c.l.b16 %v79
      %v112 = vunpack.c.l.b16 %v80
      %v113 = vunpack.c.l.b16 %v81
      %v114 = vunpack.c.l.b16 %v82
      %v115 = vunpack.c.l.b16 %v83
      %v116 = vunpack.c.l.b16 %v84
      %v117 = vunpack.c.l.b16 %v85
      %v118 = vunpack.c.l.b16 %v86
      %v119 = vunpack.c.l.b16 %v87
      %v120 = vunpack.c.l.b16 %v88
      %v121 = vunpack.c.l.b16 %v89
      %v122 = vunpack.c.l.b16 %v90
      %v123 = vunpack.c.l.b16 %v91
      %v124 = vunpack.c.l.b16 %v92
      %v125 = vunpack.c.l.b16 %v93
      %v126 = vpack.c.b16 %v111, %v110
      %v127 = vpack.c.b16 %v113, %v112
      %v128 = vpack.c.b16 %v115, %v114
      %v129 = vpack.c.b16 %v117, %v116
      %v130 = vpack.c.b16 %v119, %v118
      %v131 = vpack.c.b16 %v121, %v120
      %v132 = vpack.c.b16 %v123, %v122
      %v133 = vpack.c.b16 %v125, %v124
      %142 = vmatpush.bf16.msra.mxu0 %v133
      %143 = vmatpush.bf16.msra.mxu0 %v132
      %144 = vmatpush.bf16.msra.mxu0 %v131
      %145 = vmatpush.bf16.msra.mxu0 %v130
      %146 = vmatpush.bf16.msra.mxu0 %v129
      %147 = vmatpush.bf16.msra.mxu0 %v128
      %148 = vmatpush.bf16.msra.mxu0 %v127
      %149 = vmatpush.bf16.msra.mxu0 %v126
      %150 = vmatmul.bf16.gmra.mxu0 %v77
      %v151 = vpop.f32.mrf.mxu0
      %v152 = vadd.f32 0.0, %v151
      %v153 = vpop.f32.mrf.mxu0
      %154 = vdwg.mxu0
      %v155 = vld [vmem:[%s2] sm:$0x1]
      %v156 = vld [vmem:[%s3] sm:$0x1]
      %v157 = vrot.slane %v152, 4
      %v158 = vadd.f32 %v152, %v157
      %v159 = vrot.slane %v158, 2
      %v160 = vadd.f32 %v158, %v159
      %v161 = vrot.slane %v160, 1
      %v162 = vadd.f32 %v160, %v161
      %v163 = vmul.f32 %v162, 0.125
      %v164 = vmul.f32 %v152, %v152
      %v165 = vrot.slane %v164, 4
      %v166 = vadd.f32 %v164, %v165
      %v167 = vrot.slane %v166, 2
      %v168 = vadd.f32 %v166, %v167
      %v169 = vrot.slane %v168, 1
      %v170 = vadd.f32 %v168, %v169
      %v171 = vmul.f32 %v170, 0.125
      %v172 = vmul.f32 %v163, %v163
      %v173 = vsub.f32 %v171, %v172
      %v174 = vadd.f32 %v173, 1e-05
      %v175 = vrsqrt.pop %v174
      %v176 = vmul.f32 %v175, %v174
      %v177 = vmul.f32 %v176, %v175
      %v178 = vmul.f32 0.5, %v177
      %v179 = vsub.f32 1.5, %v178
      %v180 = vmul.f32 %v175, %v179
      %vm181 = vweird.f32 %v174
      %vm182 = vweird.f32 %v175
      %vm183 = vmor %vm181, %vm182
      %v184 = vsel %vm183, %v175, %v180
      %v185 = vmul.f32 %v155, %v184
      %v186 = vmul.f32 %v163, %v185
      %v187 = vsub.f32 %v156, %v186
      %v189 = vperm.slane %v185, 0
      %v191 = vmul.f32 %v152, %v189
      %v193 = vperm.slane %v187, 0
      %v195 = vadd.f32 %v191, %v193
      %vm196 = vcmp.ge.f32.partialorder %v195, 0.0
      %v197 = vmul.f32 %v195, 0.01
      %v198 = vsel %vm196, %v195, %v197
      %v199 = vpack.c.bf16 %v198, %v198
      %200 = vst [vmem:[#allocation2] sm:$0xf] %v199
    $region45: #{tpu_custom_call.1} parent=1 // pred_fallthru
      _
    %v201 = vld [vmem:[#allocation2] sm:$0xf]
    %v202 = vld [vmem:[#allocation8] sm:$0xf]
    %v203 = vld [vmem:[#allocation8 + $0x4] sm:$0xf]
    %v204 = vld [vmem:[#allocation8 + $0x8] sm:$0xf]
    %v205 = vld [vmem:[#allocation8 + $0xc] sm:$0xf]
    %v206 = vld [vmem:[#allocation8 + $0x10] sm:$0xf]
    %v207 = vld [vmem:[#allocation8 + $0x14] sm:$0xf]
    %v208 = vld [vmem:[#allocation8 + $0x18] sm:$0xf]
    %v209 = vld [vmem:[#allocation8 + $0x1c] sm:$0xf]
    %v210 = vld [vmem:[#allocation8 + $0x20] sm:$0xf]
    %v211 = vld [vmem:[#allocation8 + $0x24] sm:$0xf]
    %v212 = vld [vmem:[#allocation8 + $0x28] sm:$0xf]
    %v213 = vld [vmem:[#allocation8 + $0x2c] sm:$0xf]
    %v214 = vld [vmem:[#allocation8 + $0x30] sm:$0xf]
    %v215 = vld [vmem:[#allocation8 + $0x34] sm:$0xf]
    %v216 = vld [vmem:[#allocation8 + $0x38] sm:$0xf]
    %v217 = vld [vmem:[#allocation8 + $0x3c] sm:$0xf]
    %v234 = vunpack.c.l.b16 %v202
    %v235 = vunpack.c.l.b16 %v203
    %v236 = vunpack.c.l.b16 %v204
    %v237 = vunpack.c.l.b16 %v205
    %v238 = vunpack.c.l.b16 %v206
    %v239 = vunpack.c.l.b16 %v207
    %v240 = vunpack.c.l.b16 %v208
    %v241 = vunpack.c.l.b16 %v209
    %v242 = vunpack.c.l.b16 %v210
    %v243 = vunpack.c.l.b16 %v211
    %v244 = vunpack.c.l.b16 %v212
    %v245 = vunpack.c.l.b16 %v213
    %v246 = vunpack.c.l.b16 %v214
    %v247 = vunpack.c.l.b16 %v215
    %v248 = vunpack.c.l.b16 %v216
    %v249 = vunpack.c.l.b16 %v217
    %v250 = vpack.c.b16 %v235, %v234
    %v251 = vpack.c.b16 %v237, %v236
    %v252 = vpack.c.b16 %v239, %v238
    %v253 = vpack.c.b16 %v241, %v240
    %v254 = vpack.c.b16 %v243, %v242
    %v255 = vpack.c.b16 %v245, %v244
    %v256 = vpack.c.b16 %v247, %v246
    %v257 = vpack.c.b16 %v249, %v248
    %266 = vmatpush.bf16.msra.mxu0 %v257
    %267 = vmatpush.bf16.msra.mxu0 %v256
    %268 = vmatpush.bf16.msra.mxu0 %v255
    %269 = vmatpush.bf16.msra.mxu0 %v254
    %270 = vmatpush.bf16.msra.mxu0 %v253
    %271 = vmatpush.bf16.msra.mxu0 %v252
    %272 = vmatpush.bf16.msra.mxu0 %v251
    %273 = vmatpush.bf16.msra.mxu0 %v250
    %274 = vmatmul.bf16.gmra.mxu0 %v201
    %v275 = vpop.f32.mrf.mxu0
    %v276 = vadd.f32 0.0, %v275
    %v277 = vpop.f32.mrf.mxu0
    %278 = vdwg.mxu0
    %v279 = vld [vmem:[%s5] sm:$0x1]
    %v280 = vld [vmem:[%s6] sm:$0x1]
    %v281 = vrot.slane %v276, 4
    %v282 = vadd.f32 %v276, %v281
    %v283 = vrot.slane %v282, 2
    %v284 = vadd.f32 %v282, %v283
    %v285 = vrot.slane %v284, 1
    %v286 = vadd.f32 %v284, %v285
    %v287 = vmul.f32 %v286, 0.125
    %v288 = vmul.f32 %v276, %v276
    %v289 = vrot.slane %v288, 4
    %v290 = vadd.f32 %v288, %v289
    %v291 = vrot.slane %v290, 2
    %v292 = vadd.f32 %v290, %v291
    %v293 = vrot.slane %v292, 1
    %v294 = vadd.f32 %v292, %v293
    %v295 = vmul.f32 %v294, 0.125
    %v296 = vmul.f32 %v287, %v287
    %v297 = vsub.f32 %v295, %v296
    %v298 = vadd.f32 %v297, 1e-05
    %v299 = vrsqrt.pop %v298
    %v300 = vmul.f32 %v299, %v298
    %v301 = vmul.f32 %v300, %v299
    %v302 = vmul.f32 0.5, %v301
    %v303 = vsub.f32 1.5, %v302
    %v304 = vmul.f32 %v299, %v303
    %vm305 = vweird.f32 %v298
    %vm306 = vweird.f32 %v299
    %vm307 = vmor %vm305, %vm306
    %v308 = vsel %vm307, %v299, %v304
    %v309 = vmul.f32 %v279, %v308
    %v310 = vmul.f32 %v287, %v309
    %v311 = vsub.f32 %v280, %v310
    %v313 = vperm.slane %v309, 0
    %v315 = vmul.f32 %v276, %v313
    %v317 = vperm.slane %v311, 0
    %v319 = vadd.f32 %v315, %v317
    %vm320 = vcmp.ge.f32.partialorder %v319, 0.0
    %v321 = vmul.f32 %v319, 0.01
    %v322 = vsel %vm320, %v319, %v321
    %323 = vst [vmem:[#allocation9] sm:$0xff] %v322
    // Predicated region
    $region46: #{tpu_custom_call.1} parent=1 // pred_check
      _
    $region47: #{tpu_custom_call.1} parent=1 // pred_check_branch
      %325 = sbr.rel (0) target = $region49
    $region48: #{tpu_custom_call.1} parent=1 // pred_region
      %327 = vsyncadd [#allocation5], 0
      %s329 = sshll.u32 [#allocation9], 4
      %s330 = int_to_ptr.vmem [resolvable:$true] %s329
      %s331 = sshll.u32 %s7, 4
      %s332 = int_to_ptr.hbm [resolvable:$true] %s331
      %334 = dma.vmem_to_hbm [thread:$0]  %s330, 128, %s332, [#allocation5]
    $region49: #{tpu_custom_call.1} parent=1 // pred_fallthru
      _
    // Predicated region
    $region50: #{tpu_custom_call.1} parent=1 // pred_check
      _
    $region51: #{tpu_custom_call.1} parent=1 // pred_check_branch
      %336 = sbr.rel (0) target = $region53
    $region52: #{tpu_custom_call.1} parent=1 // pred_region
      %338 = dma.done [#allocation5], 128
    $region53: #{tpu_custom_call.1} parent=1 // pred_fallthru
      _
    %339 = vsyncpa [#allocation4], 1
    %340 = vsyncpa [#allocation7], 1
    %341 = vsyncpa [#allocation5], 1

</llo_original>
